<compile_context>
chip_gen: v7x
topology: tpu7x:2x2x1
jax: 0.10.0
libtpu: 0.0.40
codegen_flags: <defaults>
</compile_context>

<pallas_src>
import functools

import numpy as np
import jax
import jax.numpy as jnp
from jax.experimental import pallas as pl
from jax.experimental.pallas import tpu as pltpu


def _downsample1d_kernel(xe_ref, xo_ref, o_ref, *, odd_length):
    # xe_ref: (TR, Lo)     even samples x[2i]    -> center tap (weight 1/2)
    # xo_ref: (TR, L//2)   odd samples  x[2i+1]  -> right tap  (weight 1/4)
    xe = xe_ref[...]
    xo = xo_ref[...]
    if odd_length:
        # Reflect pad on the right: the last output's right tap is
        # x[L] -> reflect -> x[L-2] == xo[-1].
        xo = jnp.concatenate([xo, xo[:, -1:]], axis=1)
    # Left tap x[2i-1] == xo[i-1]; reflect pad on the left gives
    # x[-1] = x[1] == xo[0].
    if xo.shape[1] == 1:
        left = xo
    else:
        left = jnp.concatenate([xo[:, :1], xo[:, :-1]], axis=1)
    # (left + 2*center + right) / 4, computed in the input dtype.
    o_ref[...] = ((left + xo) * 0.25 + xe * 0.5).astype(o_ref.dtype)


def _vmem_capacity_bytes():
    """Per-core VMEM capacity; conservative fallback if the query fails."""
    try:
        info = pltpu.get_tpu_info()
        cap = getattr(info, "vmem_capacity_bytes", None)
        if cap:
            return int(cap)
    except Exception:
        pass
    return 64 << 20  # v7x per-TensorCore VMEM (smallest of v5e/v6e/v7x)


def downsample1d(x, *, filt_size=3, stride=2, pad_off=0, pad_type="reflect"):
    """Pallas Downsample1D forward. x: (N, C, L)."""
    # TODO(synk): only the default Downsample1D config (reflect pad,
    # filt_size=3, stride=2, pad_off=0) is implemented in the Pallas path.
    if filt_size != 3 or stride != 2 or pad_off != 0 or pad_type not in ("refl", "reflect"):
        raise NotImplementedError("Pallas path implements the Downsample1D defaults only")
    N, C, L = x.shape
    assert L >= 2, "reflection padding requires L >= 2"
    Lo = (L - 1) // 2 + 1                 # floor((L + 2*1 - 3)/2) + 1
    n_odd = L // 2
    odd_length = (L % 2 == 1)

    R = N * C
    xf = x.reshape(R, L)                  # free reshape, no data movement
    xe = xf[:, 0::2]                      # (R, Lo)     x[2i]
    xo = xf[:, 1::2]                      # (R, L//2)   x[2i+1]

    # --- per-generation VMEM sizing -------------------------------------
    itemsize = jnp.dtype(x.dtype).itemsize
    vmem_cap = _vmem_capacity_bytes()
    band_budget = (vmem_cap * 3) // 8     # ~24 MiB on v7x, ~48 MiB on v5e/v6e
    vmem_limit = min((vmem_cap * 3) // 4, 112 << 20)

    # Double-buffered xe/xo/out blocks plus in-kernel temporaries.
    bytes_per_row = 10 * Lo * itemsize
    tr_cap = max(8, min(1024, ((band_budget // max(1, bytes_per_row)) // 8) * 8))

    # --- row-band grid: >= MIN_STEPS steps whenever R allows -------------
    MIN_STEPS = 8
    if R <= 8:
        TR = R                            # single full-extent block
    else:
        tr_target = max(8, ((-(-R // MIN_STEPS)) + 7) // 8 * 8)
        TR = min(tr_cap, tr_target)
    grid = (pl.cdiv(R, TR),)

    kernel = functools.partial(_downsample1d_kernel, odd_length=odd_length)
    out = pl.pallas_call(
        kernel,
        out_shape=jax.ShapeDtypeStruct((R, Lo), x.dtype),
        grid=grid,
        in_specs=[pl.BlockSpec((TR, Lo), lambda i: (i, 0)),
                  pl.BlockSpec((TR, n_odd), lambda i: (i, 0))],
        out_specs=pl.BlockSpec((TR, Lo), lambda i: (i, 0)),
        compiler_params=pltpu.CompilerParams(
            dimension_semantics=("parallel",),
            allow_input_fusion=[True, True],
            vmem_limit_bytes=vmem_limit),
    )(xe, xo)
    return out.reshape(N, C, Lo)


def downsample1d_ref(x, *, filt_size=3, stride=2):
    """Pure-JAX reference (same math as the PyTorch module defaults)."""
    N, C, L = x.shape
    a = np.array([1.0, 2.0, 1.0])
    filt = jnp.asarray(a / a.sum(), dtype=jnp.float32)
    w = jnp.broadcast_to(filt, (C, 1, filt_size))
    xp = jnp.pad(x.astype(jnp.float32), ((0, 0), (0, 0), (1, 1)), mode="reflect")
    y = jax.lax.conv_general_dilated(
        xp, w, window_strides=(stride,), padding=[(0, 0)],
        feature_group_count=C, dimension_numbers=("NCH", "OIH", "NCH"))
    return y.astype(x.dtype)


if __name__ == "__main__":
    key = jax.random.PRNGKey(0)
    x = jax.random.normal(key, (2, 4, 16), dtype=jnp.float32)   # (N, C, L)

    out = jax.block_until_ready(downsample1d(x))
    ref = jax.block_until_ready(downsample1d_ref(x))

    assert out.shape == (2, 4, 8), out.shape
    if not np.allclose(np.asarray(out), np.asarray(ref), rtol=1e-5, atol=1e-5):
        raise AssertionError("Pallas Downsample1D does not match reference")
    print("KERNEL_OK")
</pallas_src>

<mosaic_0001>
module attributes {stable_mosaic.version = 11 : i64} {
  func.func @_downsample1d_kernel(%arg0: i32, %arg1: memref<8x8xf32, #tpu.memory_space<vmem>>, %arg2: memref<8x8xf32, #tpu.memory_space<vmem>>, %arg3: memref<8x8xf32, #tpu.memory_space<vmem>>) attributes {dimension_semantics = [#tpu.dimension_semantics<parallel>], iteration_bounds = array<i64: 1>, scalar_prefetch = 0 : i64, scratch_operands = 0 : i64, tpu.core_type = #tpu.core_type<tc>, window_params = [{transform_indices = @transform_0, window_bounds = array<i64: 8, 8>}, {transform_indices = @transform_1, window_bounds = array<i64: 8, 8>}, {transform_indices = @transform_2, window_bounds = array<i64: 8, 8>}]} {
    %c0 = arith.constant 0 : index
    %c0_0 = arith.constant 0 : index
    %0 = vector.load %arg1[%c0, %c0_0] : memref<8x8xf32, #tpu.memory_space<vmem>>, vector<8x8xf32>
    %c0_1 = arith.constant 0 : index
    %c0_2 = arith.constant 0 : index
    %1 = vector.load %arg2[%c0_1, %c0_2] : memref<8x8xf32, #tpu.memory_space<vmem>>, vector<8x8xf32>
    %2 = vector.extract_strided_slice %1 {offsets = [0, 0], sizes = [8, 1], strides = [1, 1]} : vector<8x8xf32> to vector<8x1xf32>
    %3 = vector.extract_strided_slice %1 {offsets = [0, 0], sizes = [8, 7], strides = [1, 1]} : vector<8x8xf32> to vector<8x7xf32>
    %4 = tpu.concatenate %2, %3 in 1 : vector<8x1xf32>, vector<8x7xf32> -> vector<8x8xf32>
    %5 = arith.addf %4, %1 : vector<8x8xf32>
    %cst = arith.constant 2.500000e-01 : f32
    %6 = vector.broadcast %cst : f32 to vector<8x8xf32>
    %7 = arith.mulf %5, %6 : vector<8x8xf32>
    %cst_3 = arith.constant 5.000000e-01 : f32
    %8 = vector.broadcast %cst_3 : f32 to vector<8x8xf32>
    %9 = arith.mulf %0, %8 : vector<8x8xf32>
    %10 = arith.addf %7, %9 : vector<8x8xf32>
    %c0_4 = arith.constant 0 : index
    %c0_5 = arith.constant 0 : index
    %11 = vector.load %arg3[%c0_4, %c0_5] : memref<8x8xf32, #tpu.memory_space<vmem>>, vector<8x8xf32>
    tpu.vector_store %arg3[%c0_4, %c0_5], %10 {strides = array<i32>} : memref<8x8xf32, #tpu.memory_space<vmem>>, vector<8x8xf32>,
    return
  }
  func.func @transform_0(%arg0: i32) -> (i32, i32) {
    %c0_i32 = arith.constant 0 : i32
    %c0_i32_0 = arith.constant 0 : i32
    return %arg0, %c0_i32 : i32, i32
  }
  func.func @transform_1(%arg0: i32) -> (i32, i32) {
    %c0_i32 = arith.constant 0 : i32
    %c0_i32_0 = arith.constant 0 : i32
    return %arg0, %c0_i32 : i32, i32
  }
  func.func @transform_2(%arg0: i32) -> (i32, i32) {
    %c0_i32 = arith.constant 0 : i32
    %c0_i32_0 = arith.constant 0 : i32
    return %arg0, %c0_i32 : i32, i32
  }
}

</mosaic_0001>

<llo_original>
// kernel: tpu_custom_call.1
$region0: #{tpu_custom_call.1}
  #allocation0 [shape = 'u32[]', space=smem, size = 0x4, offset = 0x4, fixed_abs, tag = 'smem constant byte address 0x4 - core index']
  #allocation1 [shape = 'u32[144,128]{1,0:T(1,128)}', space=vmem, size = 0x12000, scoped, tag = 'internal scratch']
  %s0 = inlined_call_operand.hbm [shape: f32[8,8], index: 0, kind: input, shape index: {}]
  %s1 = inlined_call_operand.hbm [shape: f32[8,8], index: 1, kind: input, shape index: {}]
  %s2 = inlined_call_operand.hbm [shape: f32[8,8], index: 2, kind: output, shape index: {}]
  %s3 = sld [smem:[#allocation0]]
  $region26: #{tpu_custom_call.1} parent=0
    _
  %s5 = ssub.s32 1, %s3
  %s6 = scalar_select 0, %s5, %s3
  $region1: #{tpu_custom_call.1} parent=0
    #allocation2 [shape = 'u8[4096]{0}', space=vmem, size = 0x1000, scoped, tag = 'input window, operand 0, single buffered']
    #allocation3 [shape = 's32[1]{0}', space=sflag, size = 0x4, scoped, tag = 'scoped memory for tpu_custom_call.1']
    #allocation4 [shape = 's32[1]{0}', space=sflag, size = 0x4, scoped, tag = 'scoped memory for tpu_custom_call.1']
    #allocation5 [shape = 'u8[4096]{0}', space=vmem, size = 0x1000, scoped, tag = 'input window, operand 1, single buffered']
    #allocation6 [shape = 's32[1]{0}', space=sflag, size = 0x4, scoped, tag = 'scoped memory for tpu_custom_call.1']
    #allocation7 [shape = 'u8[4096]{0}', space=vmem, size = 0x1000, scoped, tag = 'output window, operand 0, single buffered']
    %7 = vsyncpa [#allocation3], 0
    %8 = vsyncpa [#allocation6], 0
    %9 = vsyncpa [#allocation4], 0
    // Predicated region
    $region2: #{tpu_custom_call.1} parent=1 // pred_check
      _
    $region3: #{tpu_custom_call.1} parent=1 // pred_check_branch
      %11 = sbr.rel (0) target = $region5
    $region4: #{tpu_custom_call.1} parent=1 // pred_region
      %s13 = ssub.s32 128, 128
      %14 = vsyncadd [#allocation3], %s13
      %s16 = sshll.u32 [#allocation2], 4
      %s17 = int_to_ptr.vmem [resolvable:$true] %s16
      %19 = dma.hbm_to_vmem [thread:$0]  %s0, 128, %s17, [#allocation3]
    $region5: #{tpu_custom_call.1} parent=1 // pred_fallthru
      _
    // Predicated region
    $region6: #{tpu_custom_call.1} parent=1 // pred_check
      _
    $region7: #{tpu_custom_call.1} parent=1 // pred_check_branch
      %21 = sbr.rel (0) target = $region9
    $region8: #{tpu_custom_call.1} parent=1 // pred_region
      %s23 = ssub.s32 128, 128
      %24 = vsyncadd [#allocation6], %s23
      %s26 = sshll.u32 [#allocation5], 4
      %s27 = int_to_ptr.vmem [resolvable:$true] %s26
      %29 = dma.hbm_to_vmem [thread:$0]  %s1, 128, %s27, [#allocation6]
    $region9: #{tpu_custom_call.1} parent=1 // pred_fallthru
      _
    // Predicated region
    $region10: #{tpu_custom_call.1} parent=1 // pred_check
      _
    $region11: #{tpu_custom_call.1} parent=1 // pred_check_branch
      %31 = sbr.rel (0) target = $region13
    $region12: #{tpu_custom_call.1} parent=1 // pred_region
      %32 = dma.done [#allocation3], 128
    $region13: #{tpu_custom_call.1} parent=1 // pred_fallthru
      _
    // Predicated region
    $region14: #{tpu_custom_call.1} parent=1 // pred_check
      _
    $region15: #{tpu_custom_call.1} parent=1 // pred_check_branch
      %34 = sbr.rel (0) target = $region17
    $region16: #{tpu_custom_call.1} parent=1 // pred_region
      %35 = dma.done [#allocation6], 128
    $region17: #{tpu_custom_call.1} parent=1 // pred_fallthru
      _
    %v36 = vld [vmem:[#allocation2] sm:$0xff]
    %v37 = vld [vmem:[#allocation5] sm:$0xff]
    %39 = vrot.lane.b32.xlu0 %v37, 1
    %v40 = vpop.permute.xlu0 %39
    %vm42 = vcmask 7168
    %v43 = vsel %vm42, %v37, %v40
    %v44 = vadd.f32 %v43, %v37
    %v45 = vmul.f32 %v44, 0.25
    %v46 = vmul.f32 %v36, 0.5
    %v47 = vadd.f32 %v45, %v46
    %vm48 = vcmask 64512
    %49 = vst.msk [vmem:[#allocation7] sm:$0xff] %vm48, %v47
    // Predicated region
    $region18: #{tpu_custom_call.1} parent=1 // pred_check
      _
    $region19: #{tpu_custom_call.1} parent=1 // pred_check_branch
      %51 = sbr.rel (0) target = $region21
    $region20: #{tpu_custom_call.1} parent=1 // pred_region
      %s53 = ssub.s32 128, 128
      %54 = vsyncadd [#allocation4], %s53
      %s56 = sshll.u32 [#allocation7], 4
      %s57 = int_to_ptr.vmem [resolvable:$true] %s56
      %59 = dma.vmem_to_hbm [thread:$0]  %s57, 128, %s2, [#allocation4]
    $region21: #{tpu_custom_call.1} parent=1 // pred_fallthru
      _
    // Predicated region
    $region22: #{tpu_custom_call.1} parent=1 // pred_check
      _
    $region23: #{tpu_custom_call.1} parent=1 // pred_check_branch
      %61 = sbr.rel (0) target = $region25
    $region24: #{tpu_custom_call.1} parent=1 // pred_region
      %62 = dma.done [#allocation4], 128
    $region25: #{tpu_custom_call.1} parent=1 // pred_fallthru
      _
    %63 = vsyncpa [#allocation3], 1
    %64 = vsyncpa [#allocation6], 1
    %65 = vsyncpa [#allocation4], 1

</llo_original>
